<compile_context>
chip_gen: v5e
topology: v5e:2x2
jax: 0.10.0
libtpu: 0.0.40
codegen_flags: <defaults>
</compile_context>

<pallas_src>
import jax
import jax.numpy as jnp
import numpy as np
from jax import lax
from jax.experimental import pallas as pl
from jax.experimental.pallas import tpu as pltpu


def _round_up(x, m):
    return ((x + m - 1) // m) * m


def resblock_forward(x_nchw, weight_oihw, bias):
    """x_nchw: (N, C, H, W) f32, weight_oihw: (C, C, 3, 3) f32, bias: (C,) f32."""
    N, C, H, W = x_nchw.shape
    P = H * W
    # Lane-aligned halos: big enough for the max flattened tap offset +/-(W+1)
    # and multiples of 128 so the bulk copy into the scratch is aligned.
    PADL = _round_up(W + 1, 128)
    PADR = _round_up(W + 1, 128)
    PADP = PADL + P + PADR

    # >= 2 parallel grid blocks when possible (feeds both v7x TensorCores);
    # otherwise process the whole batch in one lane-dense block.
    if N >= 2 and N % 2 == 0:
        num_blocks = 2
    else:
        num_blocks = N
    NB = N // num_blocks

    # ---- wrapper-side prep: all free or negligible (no full-tensor copies of x) ----
    x_flat = x_nchw.reshape(N, C, P)                       # bitcast, no data movement
    # im2col weight slab: column index = t*C + ci, with t = kh*3 + kw.
    w_im2col = jnp.transpose(weight_oihw, (0, 2, 3, 1)).reshape(C, 9 * C)
    b_col = bias.reshape(C, 1)
    # 0/1 column masks fixing flattened-shift wrap at left/right image borders.
    col = jnp.arange(P, dtype=jnp.int32) % W
    masks = jnp.stack(
        [(col != 0).astype(jnp.float32), (col != W - 1).astype(jnp.float32)],
        axis=0,
    )                                                      # (2, P), constant block

    def kernel(x_ref, w_ref, b_ref, m_ref, o_ref, xpad_ref, cols_ref):
        # x_ref:    (NB, C, P)      images, H*W flattened onto the lane axis
        # w_ref:    (C, 9*C)        im2col weight slab [co, t*C + ci]
        # b_ref:    (C, 1)          bias
        # m_ref:    (2, P)          column masks (not-leftmost, not-rightmost)
        # o_ref:    (NB, C, P)      output
        # xpad_ref: (NB, C, PADP)   zero-haloed flattened images (VMEM scratch)
        # cols_ref: (9*C, NB*P)     im2col matrix (VMEM scratch)

        # NOTE: the reference module computes ReLU(x) and discards it; it has
        # no effect on the output, so it is not materialized here.

        # Zero ONLY the halos, every step (per-core scratch under 'parallel').
        xpad_ref[:, :, :PADL] = jnp.zeros((NB, C, PADL), jnp.float32)
        xpad_ref[:, :, PADL + P:] = jnp.zeros((NB, C, PADR), jnp.float32)
        # Lane-aligned bulk copy of the images into the middle of the scratch.
        xpad_ref[:, :, PADL:PADL + P] = x_ref[...]

        # Masks: load + broadcast once, outside the unrolled tap loop.
        m0 = jnp.broadcast_to(m_ref[0:1, :], (C, P))       # zero where w == 0
        m1 = jnp.broadcast_to(m_ref[1:2, :], (C, P))       # zero where w == W-1

        # Build the im2col matrix: 9 shifted (masked) taps per image.
        for nb in range(NB):
            for kh in range(3):
                for kw in range(3):
                    t = kh * 3 + kw
                    d = (kh - 1) * W + (kw - 1)
                    tap = xpad_ref[nb, :, PADL + d: PADL + d + P]   # (C, P) slice
                    if kw == 0:      # would wrap from previous row at w == 0
                        tap = tap * m0
                    elif kw == 2:    # would wrap to next row at w == W-1
                        tap = tap * m1
                    cols_ref[t * C:(t + 1) * C, nb * P:(nb + 1) * P] = tap

        # One fused MXU matmul: (C, 9C) x (9C, NB*P), K = 9*C, lane-dense N dim.
        conv = jnp.dot(w_ref[...], cols_ref[...],
                       preferred_element_type=jnp.float32)
        conv = conv + b_ref[...]                            # bias (broadcast over lanes)

        # Residual add + lane-dense store (accumulator stays in vregs).
        for nb in range(NB):
            o_ref[nb] = (x_ref[nb] + conv[:, nb * P:(nb + 1) * P]).astype(o_ref.dtype)

    out_flat = pl.pallas_call(
        kernel,
        out_shape=jax.ShapeDtypeStruct((N, C, P), x_nchw.dtype),
        grid_spec=pltpu.PrefetchScalarGridSpec(
            num_scalar_prefetch=0,
            grid=(num_blocks,),
            in_specs=[
                pl.BlockSpec((NB, C, P), lambda i: (i, 0, 0)),
                pl.BlockSpec((C, 9 * C), lambda i: (0, 0)),
                pl.BlockSpec((C, 1), lambda i: (0, 0)),
                pl.BlockSpec((2, P), lambda i: (0, 0)),
            ],
            out_specs=pl.BlockSpec((NB, C, P), lambda i: (i, 0, 0)),
            scratch_shapes=[
                pltpu.VMEM((NB, C, PADP), jnp.float32),
                pltpu.VMEM((9 * C, NB * P), jnp.float32),
            ],
        ),
        compiler_params=pltpu.CompilerParams(
            dimension_semantics=("parallel",),
            vmem_limit_bytes=32 * 1024 * 1024,
        ),
    )(x_flat, w_im2col, b_col, masks)

    return out_flat.reshape(N, C, H, W)                    # bitcast, no data movement


def _reference_forward(x_nchw, weight_oihw, bias):
    """Pure-JAX reference (lax conv) for correctness checking."""
    conv = lax.conv_general_dilated(
        x_nchw, weight_oihw,
        window_strides=(1, 1), padding=((1, 1), (1, 1)),
        dimension_numbers=("NCHW", "OIHW", "NCHW"),
    )
    return x_nchw + conv + bias.reshape(1, -1, 1, 1)


if __name__ == "__main__":
    key = jax.random.PRNGKey(0)
    k_x, k_w, k_b = jax.random.split(key, 3)

    N, C, H, W = 2, 4, 16, 16

    # Deterministic "init": uniform in +/- 1/sqrt(fan_in), like nn.Conv2d default.
    fan_in = C * 3 * 3
    bound = 1.0 / np.sqrt(fan_in)
    x = jax.random.normal(k_x, (N, C, H, W), dtype=jnp.float32)
    weight = jax.random.uniform(k_w, (C, C, 3, 3), jnp.float32, -bound, bound)
    bias = jax.random.uniform(k_b, (C,), jnp.float32, -bound, bound)

    out = jax.block_until_ready(resblock_forward(x, weight, bias))

    ref = jax.block_until_ready(_reference_forward(x, weight, bias))
    np.testing.assert_allclose(np.asarray(out), np.asarray(ref),
                               rtol=1e-5, atol=1e-5)

    print("KERNEL_OK")
</pallas_src>

<mosaic_0001>
module attributes {stable_mosaic.version = 11 : i64} {
  func.func @kernel(%arg0: i32, %arg1: memref<1x4x256xf32, #tpu.memory_space<vmem>>, %arg2: memref<4x36xf32, #tpu.memory_space<vmem>>, %arg3: memref<4x1xf32, #tpu.memory_space<vmem>>, %arg4: memref<2x256xf32, #tpu.memory_space<vmem>>, %arg5: memref<1x4x256xf32, #tpu.memory_space<vmem>>, %arg6: memref<1x4x512xf32, #tpu.memory_space<vmem>>, %arg7: memref<36x256xf32, #tpu.memory_space<vmem>>) attributes {dimension_semantics = [#tpu.dimension_semantics<parallel>], iteration_bounds = array<i64: 2>, scalar_prefetch = 0 : i64, scratch_operands = 2 : i64, tpu.core_type = #tpu.core_type<tc>, window_params = [{transform_indices = @transform_0, window_bounds = array<i64: 1, 4, 256>}, {pipeline_mode = #tpu.pipeline_mode<synchronous>, transform_indices = @transform_1, window_bounds = array<i64: 4, 36>}, {pipeline_mode = #tpu.pipeline_mode<synchronous>, transform_indices = @transform_2, window_bounds = array<i64: 4, 1>}, {pipeline_mode = #tpu.pipeline_mode<synchronous>, transform_indices = @transform_3, window_bounds = array<i64: 2, 256>}, {transform_indices = @transform_4, window_bounds = array<i64: 1, 4, 256>}]} {
    %cst = arith.constant 0.000000e+00 : f32
    %0 = vector.broadcast %cst : f32 to vector<1x4x128xf32>
    %c0 = arith.constant 0 : index
    %c0_0 = arith.constant 0 : index
    %c0_1 = arith.constant 0 : index
    %1 = vector.load %arg6[%c0, %c0_0, %c0_1] : memref<1x4x512xf32, #tpu.memory_space<vmem>>, vector<1x4x128xf32>
    tpu.vector_store %arg6[%c0, %c0_0, %c0_1], %0 {strides = array<i32>} : memref<1x4x512xf32, #tpu.memory_space<vmem>>, vector<1x4x128xf32>,
    %cst_2 = arith.constant 0.000000e+00 : f32
    %2 = vector.broadcast %cst_2 : f32 to vector<1x4x128xf32>
    %c0_3 = arith.constant 0 : index
    %c0_4 = arith.constant 0 : index
    %c384 = arith.constant 384 : index
    %3 = vector.load %arg6[%c0_3, %c0_4, %c384] : memref<1x4x512xf32, #tpu.memory_space<vmem>>, vector<1x4x128xf32>
    tpu.vector_store %arg6[%c0_3, %c0_4, %c384], %2 {strides = array<i32>} : memref<1x4x512xf32, #tpu.memory_space<vmem>>, vector<1x4x128xf32>,
    %c0_5 = arith.constant 0 : index
    %c0_6 = arith.constant 0 : index
    %c0_7 = arith.constant 0 : index
    %4 = vector.load %arg1[%c0_5, %c0_6, %c0_7] : memref<1x4x256xf32, #tpu.memory_space<vmem>>, vector<1x4x256xf32>
    %c0_8 = arith.constant 0 : index
    %c0_9 = arith.constant 0 : index
    %c128 = arith.constant 128 : index
    %5 = vector.load %arg6[%c0_8, %c0_9, %c128] : memref<1x4x512xf32, #tpu.memory_space<vmem>>, vector<1x4x256xf32>
    tpu.vector_store %arg6[%c0_8, %c0_9, %c128], %4 {strides = array<i32>} : memref<1x4x512xf32, #tpu.memory_space<vmem>>, vector<1x4x256xf32>,
    %c0_10 = arith.constant 0 : index
    %c0_11 = arith.constant 0 : index
    %6 = vector.load %arg4[%c0_10, %c0_11] : memref<2x256xf32, #tpu.memory_space<vmem>>, vector<1x256xf32>
    %7 = vector.shape_cast %6 : vector<1x256xf32> to vector<1x256xf32>
    %8 = vector.broadcast %7 : vector<1x256xf32> to vector<4x256xf32>
    %c1 = arith.constant 1 : index
    %c0_12 = arith.constant 0 : index
    %9 = vector.load %arg4[%c1, %c0_12] : memref<2x256xf32, #tpu.memory_space<vmem>>, vector<1x256xf32>
    %10 = vector.shape_cast %9 : vector<1x256xf32> to vector<1x256xf32>
    %11 = vector.broadcast %10 : vector<1x256xf32> to vector<4x256xf32>
    %c0_13 = arith.constant 0 : index
    %c0_14 = arith.constant 0 : index
    %c111 = arith.constant 111 : index
    %12 = vector.load %arg6[%c0_13, %c0_14, %c111] : memref<1x4x512xf32, #tpu.memory_space<vmem>>, vector<1x4x256xf32>
    %13 = vector.shape_cast %12 : vector<1x4x256xf32> to vector<4x256xf32>
    %14 = arith.mulf %13, %8 : vector<4x256xf32>
    %c0_15 = arith.constant 0 : index
    %c0_16 = arith.constant 0 : index
    %15 = vector.load %arg7[%c0_15, %c0_16] : memref<36x256xf32, #tpu.memory_space<vmem>>, vector<4x256xf32>
    tpu.vector_store %arg7[%c0_15, %c0_16], %14 {strides = array<i32>} : memref<36x256xf32, #tpu.memory_space<vmem>>, vector<4x256xf32>,
    %c0_17 = arith.constant 0 : index
    %c0_18 = arith.constant 0 : index
    %c112 = arith.constant 112 : index
    %16 = vector.load %arg6[%c0_17, %c0_18, %c112] : memref<1x4x512xf32, #tpu.memory_space<vmem>>, vector<1x4x256xf32>
    %17 = vector.shape_cast %16 : vector<1x4x256xf32> to vector<4x256xf32>
    %c4 = arith.constant 4 : index
    %c0_19 = arith.constant 0 : index
    %18 = vector.load %arg7[%c4, %c0_19] : memref<36x256xf32, #tpu.memory_space<vmem>>, vector<4x256xf32>
    tpu.vector_store %arg7[%c4, %c0_19], %17 {strides = array<i32>} : memref<36x256xf32, #tpu.memory_space<vmem>>, vector<4x256xf32>,
    %c0_20 = arith.constant 0 : index
    %c0_21 = arith.constant 0 : index
    %c113 = arith.constant 113 : index
    %19 = vector.load %arg6[%c0_20, %c0_21, %c113] : memref<1x4x512xf32, #tpu.memory_space<vmem>>, vector<1x4x256xf32>
    %20 = vector.shape_cast %19 : vector<1x4x256xf32> to vector<4x256xf32>
    %21 = arith.mulf %20, %11 : vector<4x256xf32>
    %c8 = arith.constant 8 : index
    %c0_22 = arith.constant 0 : index
    %22 = vector.load %arg7[%c8, %c0_22] : memref<36x256xf32, #tpu.memory_space<vmem>>, vector<4x256xf32>
    tpu.vector_store %arg7[%c8, %c0_22], %21 {strides = array<i32>} : memref<36x256xf32, #tpu.memory_space<vmem>>, vector<4x256xf32>,
    %c0_23 = arith.constant 0 : index
    %c0_24 = arith.constant 0 : index
    %c127 = arith.constant 127 : index
    %23 = vector.load %arg6[%c0_23, %c0_24, %c127] : memref<1x4x512xf32, #tpu.memory_space<vmem>>, vector<1x4x256xf32>
    %24 = vector.shape_cast %23 : vector<1x4x256xf32> to vector<4x256xf32>
    %25 = arith.mulf %24, %8 : vector<4x256xf32>
    %c12 = arith.constant 12 : index
    %c0_25 = arith.constant 0 : index
    %26 = vector.load %arg7[%c12, %c0_25] : memref<36x256xf32, #tpu.memory_space<vmem>>, vector<4x256xf32>
    tpu.vector_store %arg7[%c12, %c0_25], %25 {strides = array<i32>} : memref<36x256xf32, #tpu.memory_space<vmem>>, vector<4x256xf32>,
    %c0_26 = arith.constant 0 : index
    %c0_27 = arith.constant 0 : index
    %c128_28 = arith.constant 128 : index
    %27 = vector.load %arg6[%c0_26, %c0_27, %c128_28] : memref<1x4x512xf32, #tpu.memory_space<vmem>>, vector<1x4x256xf32>
    %28 = vector.shape_cast %27 : vector<1x4x256xf32> to vector<4x256xf32>
    %c16 = arith.constant 16 : index
    %c0_29 = arith.constant 0 : index
    %29 = vector.load %arg7[%c16, %c0_29] : memref<36x256xf32, #tpu.memory_space<vmem>>, vector<4x256xf32>
    tpu.vector_store %arg7[%c16, %c0_29], %28 {strides = array<i32>} : memref<36x256xf32, #tpu.memory_space<vmem>>, vector<4x256xf32>,
    %c0_30 = arith.constant 0 : index
    %c0_31 = arith.constant 0 : index
    %c129 = arith.constant 129 : index
    %30 = vector.load %arg6[%c0_30, %c0_31, %c129] : memref<1x4x512xf32, #tpu.memory_space<vmem>>, vector<1x4x256xf32>
    %31 = vector.shape_cast %30 : vector<1x4x256xf32> to vector<4x256xf32>
    %32 = arith.mulf %31, %11 : vector<4x256xf32>
    %c20 = arith.constant 20 : index
    %c0_32 = arith.constant 0 : index
    %33 = vector.load %arg7[%c20, %c0_32] : memref<36x256xf32, #tpu.memory_space<vmem>>, vector<4x256xf32>
    tpu.vector_store %arg7[%c20, %c0_32], %32 {strides = array<i32>} : memref<36x256xf32, #tpu.memory_space<vmem>>, vector<4x256xf32>,
    %c0_33 = arith.constant 0 : index
    %c0_34 = arith.constant 0 : index
    %c143 = arith.constant 143 : index
    %34 = vector.load %arg6[%c0_33, %c0_34, %c143] : memref<1x4x512xf32, #tpu.memory_space<vmem>>, vector<1x4x256xf32>
    %35 = vector.shape_cast %34 : vector<1x4x256xf32> to vector<4x256xf32>
    %36 = arith.mulf %35, %8 : vector<4x256xf32>
    %c24 = arith.constant 24 : index
    %c0_35 = arith.constant 0 : index
    %37 = vector.load %arg7[%c24, %c0_35] : memref<36x256xf32, #tpu.memory_space<vmem>>, vector<4x256xf32>
    tpu.vector_store %arg7[%c24, %c0_35], %36 {strides = array<i32>} : memref<36x256xf32, #tpu.memory_space<vmem>>, vector<4x256xf32>,
    %c0_36 = arith.constant 0 : index
    %c0_37 = arith.constant 0 : index
    %c144 = arith.constant 144 : index
    %38 = vector.load %arg6[%c0_36, %c0_37, %c144] : memref<1x4x512xf32, #tpu.memory_space<vmem>>, vector<1x4x256xf32>
    %39 = vector.shape_cast %38 : vector<1x4x256xf32> to vector<4x256xf32>
    %c28 = arith.constant 28 : index
    %c0_38 = arith.constant 0 : index
    %40 = vector.load %arg7[%c28, %c0_38] : memref<36x256xf32, #tpu.memory_space<vmem>>, vector<4x256xf32>
    tpu.vector_store %arg7[%c28, %c0_38], %39 {strides = array<i32>} : memref<36x256xf32, #tpu.memory_space<vmem>>, vector<4x256xf32>,
    %c0_39 = arith.constant 0 : index
    %c0_40 = arith.constant 0 : index
    %c145 = arith.constant 145 : index
    %41 = vector.load %arg6[%c0_39, %c0_40, %c145] : memref<1x4x512xf32, #tpu.memory_space<vmem>>, vector<1x4x256xf32>
    %42 = vector.shape_cast %41 : vector<1x4x256xf32> to vector<4x256xf32>
    %43 = arith.mulf %42, %11 : vector<4x256xf32>
    %c32 = arith.constant 32 : index
    %c0_41 = arith.constant 0 : index
    %44 = vector.load %arg7[%c32, %c0_41] : memref<36x256xf32, #tpu.memory_space<vmem>>, vector<4x256xf32>
    tpu.vector_store %arg7[%c32, %c0_41], %43 {strides = array<i32>} : memref<36x256xf32, #tpu.memory_space<vmem>>, vector<4x256xf32>,
    %c0_42 = arith.constant 0 : index
    %c0_43 = arith.constant 0 : index
    %45 = vector.load %arg2[%c0_42, %c0_43] : memref<4x36xf32, #tpu.memory_space<vmem>>, vector<4x36xf32>
    %c0_44 = arith.constant 0 : index
    %c0_45 = arith.constant 0 : index
    %46 = vector.load %arg7[%c0_44, %c0_45] : memref<36x256xf32, #tpu.memory_space<vmem>>, vector<36x256xf32>
    %cst_46 = arith.constant dense<0.000000e+00> : vector<4x256xf32>
    %47 = tpu.matmul %45, %46, %cst_46 {dimension_numbers = #tpu.dot_dimension_numbers<[1], [0], [0], [1], [0, 0, 1, 1], [], []>} : vector<4x36xf32>, vector<36x256xf32>, vector<4x256xf32> -> vector<4x256xf32>
    %c0_47 = arith.constant 0 : index
    %c0_48 = arith.constant 0 : index
    %48 = vector.load %arg3[%c0_47, %c0_48] : memref<4x1xf32, #tpu.memory_space<vmem>>, vector<4x1xf32>
    %49 = vector.broadcast %48 : vector<4x1xf32> to vector<4x256xf32>
    %50 = arith.addf %47, %49 : vector<4x256xf32>
    %c0_49 = arith.constant 0 : index
    %c0_50 = arith.constant 0 : index
    %c0_51 = arith.constant 0 : index
    %51 = vector.load %arg1[%c0_49, %c0_50, %c0_51] : memref<1x4x256xf32, #tpu.memory_space<vmem>>, vector<1x4x256xf32>
    %52 = vector.shape_cast %51 : vector<1x4x256xf32> to vector<4x256xf32>
    %53 = arith.addf %52, %50 : vector<4x256xf32>
    %c0_52 = arith.constant 0 : index
    %c0_53 = arith.constant 0 : index
    %c0_54 = arith.constant 0 : index
    %54 = vector.load %arg5[%c0_52, %c0_53, %c0_54] : memref<1x4x256xf32, #tpu.memory_space<vmem>>, vector<1x4x256xf32>
    %55 = vector.shape_cast %54 : vector<1x4x256xf32> to vector<4x256xf32>
    %56 = vector.shape_cast %53 : vector<4x256xf32> to vector<1x4x256xf32>
    tpu.vector_store %arg5[%c0_52, %c0_53, %c0_54], %56 {strides = array<i32>} : memref<1x4x256xf32, #tpu.memory_space<vmem>>, vector<1x4x256xf32>,
    return
  }
  func.func @transform_0(%arg0: i32) -> (i32, i32, i32) {
    %c0_i32 = arith.constant 0 : i32
    %c0_i32_0 = arith.constant 0 : i32
    %c0_i32_1 = arith.constant 0 : i32
    return %arg0, %c0_i32, %c0_i32_0 : i32, i32, i32
  }
  func.func @transform_1(%arg0: i32) -> (i32, i32) {
    %c0_i32 = arith.constant 0 : i32
    %c0_i32_0 = arith.constant 0 : i32
    %c0_i32_1 = arith.constant 0 : i32
    return %c0_i32, %c0_i32_0 : i32, i32
  }
  func.func @transform_2(%arg0: i32) -> (i32, i32) {
    %c0_i32 = arith.constant 0 : i32
    %c0_i32_0 = arith.constant 0 : i32
    %c0_i32_1 = arith.constant 0 : i32
    return %c0_i32, %c0_i32_0 : i32, i32
  }
  func.func @transform_3(%arg0: i32) -> (i32, i32) {
    %c0_i32 = arith.constant 0 : i32
    %c0_i32_0 = arith.constant 0 : i32
    %c0_i32_1 = arith.constant 0 : i32
    return %c0_i32, %c0_i32_0 : i32, i32
  }
  func.func @transform_4(%arg0: i32) -> (i32, i32, i32) {
    %c0_i32 = arith.constant 0 : i32
    %c0_i32_0 = arith.constant 0 : i32
    %c0_i32_1 = arith.constant 0 : i32
    return %arg0, %c0_i32, %c0_i32_0 : i32, i32, i32
  }
}

</mosaic_0001>

<llo_original>
// kernel: tpu_custom_call.1
$region0: #{tpu_custom_call.1}
  #allocation0 [shape = 'u32[]', space=smem, size = 0x4, offset = 0x4, fixed_abs, tag = 'smem constant byte address 0x4 - core index']
  #allocation1 [shape = 'u32[72,128]{1,0:T(1,128)}', space=vmem, size = 0x9000, scoped, tag = 'internal scratch']
  #allocation2 [shape = 'f32[1,4,512]{2,1,0:T(4,128)}', space=vmem, size = 0x2000, scoped, tag = 'scratch operand']
  #allocation3 [shape = 'f32[36,256]{1,0:T(8,128)}', space=vmem, size = 0xa000, scoped, tag = 'scratch operand']
  %s0 = inlined_call_operand.hbm [shape: f32[2,4,256], index: 0, kind: input, shape index: {}]
  %s1 = inlined_call_operand.vmem [shape: f32[4,36], index: 1, kind: input, shape index: {}]
  %s2 = inlined_call_operand.vmem [shape: f32[4,1], index: 2, kind: input, shape index: {}]
  %s3 = inlined_call_operand.hbm [shape: f32[2,256], index: 3, kind: input, shape index: {}]
  %s4 = inlined_call_operand.hbm [shape: f32[2,4,256], index: 4, kind: output, shape index: {}]
  %s5 = sld [smem:[#allocation0]]
  $region57: #{tpu_custom_call.1} parent=0
    _
  %s7 = ssub.s32 1, %s5
  %s8 = scalar_select 0, %s7, %s5
  $region1: #{tpu_custom_call.1} parent=0
    #allocation4 [shape = 'u8[8192]{0}', space=vmem, size = 0x2000, scoped, tag = 'input window, operand 0']
    #allocation5 [shape = 's32[2]{0}', space=sflag, size = 0x8, scoped, tag = 'scoped memory for tpu_custom_call.1']
    #allocation6 [shape = 's32[2]{0}', space=sflag, size = 0x8, scoped, tag = 'scoped memory for tpu_custom_call.1']
    #allocation7 [shape = 'u8[2048]{0}', space=vmem, size = 0x800, scoped, tag = 'input window, operand 3, single buffered']
    #allocation8 [shape = 's32[1]{0}', space=sflag, size = 0x4, scoped, tag = 'scoped memory for tpu_custom_call.1']
    #allocation9 [shape = 'u8[8192]{0}', space=vmem, size = 0x2000, scoped, tag = 'output window, operand 0']
    %9 = vsyncpa [#allocation5], 0
    %s10 = scalar_lea.sflag [#allocation5], 1
    %11 = vsyncpa %s10, 0
    %12 = vsyncpa [#allocation8], 0
    %13 = vsyncpa [#allocation6], 0
    %s14 = scalar_lea.sflag [#allocation6], 1
    %15 = vsyncpa %s14, 0
    loop: start=0, step=1, limit=4
    $region2: #{tpu_custom_call.1} parent=1 // loop_pre_header
      _
    $region3: #{tpu_custom_call.1} parent=1 // loop_header
      %s17 = sphi 0, %s21
      %p18 = scmp.ge.s32.totalorder %s17, 4
      %s27 = sphi 0, %s29
      %s30 = sphi 0, %s27
      %s31 = sphi 0, %s30
      %s47 = sphi 0, %s31
      %s51 = sphi 0, %s51
      %s53 = sphi 0, %s51
      %s54 = sphi 0, %s53
      %s68 = sphi 0, %s54
      %s72 = sphi 0, %s72
      %s74 = sphi 0, %s72
      %s75 = sphi 0, %s74
      %s89 = sphi 0, %s75
      %s93 = sphi 0, %s93
      %s95 = sphi 0, %s93
      %s96 = sphi 0, %s95
      %s110 = sphi 0, %s96
      %s116 = sphi 0, %s118
      %s119 = sphi 0, %s116
      %s120 = sphi 0, %s119
      %s136 = sphi 0, %s120
    $region4: #{tpu_custom_call.1} parent=1 // loop_header_branch
      %20 = sbr.rel (%p18) target = $region8
    $region5: #{tpu_custom_call.1} parent=1 // loop_body
      %s22 = ssub.s32 %s17, 1
      %s23 = ssub.s32 %s17, 2
      %s24 = sadd.s32 %s17, 1
      %s25 = ssub.s32 %s17, %s24
      %p26 = scmp.eq.s32.totalorder %s25, 0
      %s28 = sadd.s32 %s27, 1
      %s29 = scalar_select %p26, %s27, %s28
      %p32 = pneg %p26
      %p33 = scmp.eq.s32.totalorder %s17, 1
      %p34 = por %p32, %p33
      %p35 = scmp.ne.s32.totalorder %s27, %s30
      %p36 = scmp.eq.s32.totalorder %s17, 0
      %p37 = por %p35, %p36
      %p38 = scmp.ne.s32.totalorder %s27, %s30
      %p39 = scmp.eq.s32.totalorder %s22, 1
      %p40 = por %p38, %p39
      %p41 = scmp.ne.s32.totalorder %s30, %s31
      %p42 = scmp.eq.s32.totalorder %s22, 0
      %p43 = por %p41, %p42
      %p44 = scmp.ne.s32.totalorder %s30, %s31
      %p45 = scmp.eq.s32.totalorder %s23, 1
      %p46 = por %p44, %p45
      %p48 = scmp.ne.s32.totalorder %s31, %s47
      %p49 = scmp.eq.s32.totalorder %s23, 0
      %p50 = por %p48, %p49
      %s52 = sadd.s32 %s51, 1
      %p55 = scmp.eq.s32.totalorder %s17, 1
      %p56 = scmp.ne.s32.totalorder %s51, %s53
      %p57 = scmp.eq.s32.totalorder %s17, 0
      %p58 = por %p56, %p57
      %p59 = scmp.ne.s32.totalorder %s51, %s53
      %p60 = scmp.eq.s32.totalorder %s22, 1
      %p61 = por %p59, %p60
      %p62 = scmp.ne.s32.totalorder %s53, %s54
      %p63 = scmp.eq.s32.totalorder %s22, 0
      %p64 = por %p62, %p63
      %p65 = scmp.ne.s32.totalorder %s53, %s54
      %p66 = scmp.eq.s32.totalorder %s23, 1
      %p67 = por %p65, %p66
      %p69 = scmp.ne.s32.totalorder %s54, %s68
      %p70 = scmp.eq.s32.totalorder %s23, 0
      %p71 = por %p69, %p70
      %s73 = sadd.s32 %s72, 1
      %p76 = scmp.eq.s32.totalorder %s17, 1
      %p77 = scmp.ne.s32.totalorder %s72, %s74
      %p78 = scmp.eq.s32.totalorder %s17, 0
      %p79 = por %p77, %p78
      %p80 = scmp.ne.s32.totalorder %s72, %s74
      %p81 = scmp.eq.s32.totalorder %s22, 1
      %p82 = por %p80, %p81
      %p83 = scmp.ne.s32.totalorder %s74, %s75
      %p84 = scmp.eq.s32.totalorder %s22, 0
      %p85 = por %p83, %p84
      %p86 = scmp.ne.s32.totalorder %s74, %s75
      %p87 = scmp.eq.s32.totalorder %s23, 1
      %p88 = por %p86, %p87
      %p90 = scmp.ne.s32.totalorder %s75, %s89
      %p91 = scmp.eq.s32.totalorder %s23, 0
      %p92 = por %p90, %p91
      %s94 = sadd.s32 %s93, 1
      %p97 = scmp.eq.s32.totalorder %s17, 1
      %p98 = scmp.ne.s32.totalorder %s93, %s95
      %p99 = scmp.eq.s32.totalorder %s17, 0
      %p100 = por %p98, %p99
      %p101 = scmp.ne.s32.totalorder %s93, %s95
      %p102 = scmp.eq.s32.totalorder %s22, 1
      %p103 = por %p101, %p102
      %p104 = scmp.ne.s32.totalorder %s95, %s96
      %p105 = scmp.eq.s32.totalorder %s22, 0
      %p106 = por %p104, %p105
      %p107 = scmp.ne.s32.totalorder %s95, %s96
      %p108 = scmp.eq.s32.totalorder %s23, 1
      %p109 = por %p107, %p108
      %p111 = scmp.ne.s32.totalorder %s96, %s110
      %p112 = scmp.eq.s32.totalorder %s23, 0
      %p113 = por %p111, %p112
      %s114 = ssub.s32 %s17, %s24
      %p115 = scmp.eq.s32.totalorder %s114, 0
      %s117 = sadd.s32 %s116, 1
      %s118 = scalar_select %p115, %s116, %s117
      %p121 = pneg %p115
      %p122 = scmp.eq.s32.totalorder %s17, 1
      %p123 = por %p121, %p122
      %p124 = scmp.ne.s32.totalorder %s116, %s119
      %p125 = scmp.eq.s32.totalorder %s17, 0
      %p126 = por %p124, %p125
      %p127 = scmp.ne.s32.totalorder %s116, %s119
      %p128 = scmp.eq.s32.totalorder %s22, 1
      %p129 = por %p127, %p128
      %p130 = scmp.ne.s32.totalorder %s119, %s120
      %p131 = scmp.eq.s32.totalorder %s22, 0
      %p132 = por %p130, %p131
      %p133 = scmp.ne.s32.totalorder %s119, %s120
      %p134 = scmp.eq.s32.totalorder %s23, 1
      %p135 = por %p133, %p134
      %p137 = scmp.ne.s32.totalorder %s120, %s136
      %p138 = scmp.eq.s32.totalorder %s23, 0
      %p139 = por %p137, %p138
      %p140 = scmp.le.s32.totalorder 1, %s17
      %p141 = scmp.lt.s32.totalorder %s17, 3
      %p142 = pnand %p140, %p141
      %p143 = pneg %p142
      // Predicated region
      $region9: #{tpu_custom_call.1} parent=5 // pred_check
        _
      $region10: #{tpu_custom_call.1} parent=5 // pred_check_branch
        %145 = sbr.rel (%p142) target = $region12
      $region11: #{tpu_custom_call.1} parent=5 // pred_region
        %s146 = ssub.s32 %s17, 1
        // Predicated region
        $region13: #{tpu_custom_call.1} parent=11 // pred_check
          %p147 = pneg %p64
        $region14: #{tpu_custom_call.1} parent=11 // pred_check_branch
          %149 = sbr.rel (%p147) target = $region16
        $region15: #{tpu_custom_call.1} parent=11 // pred_region
          _
        $region16: #{tpu_custom_call.1} parent=11 // pred_fallthru
          _
        // Predicated region
        $region17: #{tpu_custom_call.1} parent=11 // pred_check
          %p150 = pneg %p85
        $region18: #{tpu_custom_call.1} parent=11 // pred_check_branch
          %152 = sbr.rel (%p150) target = $region20
        $region19: #{tpu_custom_call.1} parent=11 // pred_region
          _
        $region20: #{tpu_custom_call.1} parent=11 // pred_fallthru
          _
        // Predicated region
        $region21: #{tpu_custom_call.1} parent=11 // pred_check
          %p153 = pneg %p106
        $region22: #{tpu_custom_call.1} parent=11 // pred_check_branch
          %155 = sbr.rel (%p153) target = $region24
        $region23: #{tpu_custom_call.1} parent=11 // pred_region
          %157 = vsyncadd [#allocation8], 0
          %s159 = sshll.u32 %s3, 4
          %s160 = int_to_ptr.hbm [resolvable:$true] %s159
          %s161 = sshll.u32 [#allocation7], 4
          %s162 = int_to_ptr.vmem [resolvable:$true] %s161
          %164 = dma.hbm_to_vmem [thread:$0]  %s160, 64, %s162, [#allocation8]
        $region24: #{tpu_custom_call.1} parent=11 // pred_fallthru
          _
      $region12: #{tpu_custom_call.1} parent=5 // pred_fallthru
        _
      %p165 = scmp.lt.s32.totalorder %s17, 2
      // Predicated region
      $region25: #{tpu_custom_call.1} parent=5 // pred_check
        %p166 = pneg %p165
      $region26: #{tpu_custom_call.1} parent=5 // pred_check_branch
        %168 = sbr.rel (%p166) target = $region28
      $region27: #{tpu_custom_call.1} parent=5 // pred_region
        // Predicated region
        $region29: #{tpu_custom_call.1} parent=27 // pred_check
          %p169 = pneg %p37
        $region30: #{tpu_custom_call.1} parent=27 // pred_check_branch
          %171 = sbr.rel (%p169) target = $region32
        $region31: #{tpu_custom_call.1} parent=27 // pred_region
          %s172 = sand.u32 %s27, 1
          %s173 = scalar_lea.sflag [#allocation5], %s172
          %s174 = sand.u32 %s27, 1
          %s175 = smul.addr %s174, 8
          %s176 = scalar_lea.vmem [#allocation4], %s175
          %178 = vsyncadd %s173, 0
          %s179 = smul.addr %s17, 2
          %s180 = smul.addr %s179, 4
          %s181 = scalar_lea.hbm %s0, %s180
          %s183 = sshll.u32 %s181, 4
          %s184 = int_to_ptr.hbm [resolvable:$true] %s183
          %s185 = sshll.u32 %s176, 4
          %s186 = int_to_ptr.vmem [resolvable:$true] %s185
          %188 = dma.hbm_to_vmem [thread:$0]  %s184, 128, %s186, %s173
        $region32: #{tpu_custom_call.1} parent=27 // pred_fallthru
          _
      $region28: #{tpu_custom_call.1} parent=5 // pred_fallthru
        _
      %p189 = scmp.le.s32.totalorder 1, %s17
      %p190 = scmp.lt.s32.totalorder %s17, 3
      %p191 = pnand %p189, %p190
      %p192 = pneg %p191
      // Predicated region
      $region33: #{tpu_custom_call.1} parent=5 // pred_check
        _
      $region34: #{tpu_custom_call.1} parent=5 // pred_check_branch
        %194 = sbr.rel (%p191) target = $region36
      $region35: #{tpu_custom_call.1} parent=5 // pred_region
        %s195 = ssub.s32 %s17, 1
        %s196 = sand.u32 %s30, 1
        %s197 = scalar_lea.sflag [#allocation5], %s196
        %s198 = sand.u32 %s30, 1
        %s199 = smul.addr %s198, 8
        %s200 = scalar_lea.vmem [#allocation4], %s199
        // Predicated region
        $region37: #{tpu_custom_call.1} parent=35 // pred_check
          %p201 = pneg %p43
        $region38: #{tpu_custom_call.1} parent=35 // pred_check_branch
          %203 = sbr.rel (%p201) target = $region40
        $region39: #{tpu_custom_call.1} parent=35 // pred_region
          %205 = dma.done %s197, 128
        $region40: #{tpu_custom_call.1} parent=35 // pred_fallthru
          _
        // Predicated region
        $region41: #{tpu_custom_call.1} parent=35 // pred_check
          %p206 = pneg %p106
        $region42: #{tpu_custom_call.1} parent=35 // pred_check_branch
          %208 = sbr.rel (%p206) target = $region44
        $region43: #{tpu_custom_call.1} parent=35 // pred_region
          %210 = dma.done [#allocation8], 64
        $region44: #{tpu_custom_call.1} parent=35 // pred_fallthru
          _
        %s211 = sand.u32 %s30, 1
        %s212 = scalar_lea.sflag [#allocation5], %s211
        %s213 = sand.u32 %s30, 1
        %s214 = smul.addr %s213, 8
        %s215 = scalar_lea.vmem [#allocation4], %s214
        %p216 = pneg %p43
        %p217 = pneg %p40
        %p218 = pneg %p64
        %p219 = pneg %p61
        %p220 = pneg %p85
        %p221 = pneg %p82
        %p222 = pneg %p106
        %p223 = pneg %p103
        %p224 = pneg %p132
        %p225 = pneg %p129
        %s226 = sand.u32 %s119, 1
        %s227 = scalar_lea.sflag [#allocation6], %s226
        %s228 = sand.u32 %s119, 1
        %s229 = smul.addr %s228, 8
        %s230 = scalar_lea.vmem [#allocation9], %s229
        %231 = vst [vmem:[#allocation2] sm:$0xf] 0.0
        %232 = vst [vmem:[#allocation2 + $0xc] sm:$0xf] 0.0
        %v233 = vld [vmem:[%s200] sm:$0xff]
        %234 = vst [vmem:[#allocation2 + $0x4] sm:$0xff] %v233
        %v235 = vld [vmem:[#allocation7] ss:$2 sm:$0x3]
        %v237 = vperm.slane %v235, 0
        %v238 = vperm.slane %v235, 1
        %s239 = scalar_lea.vmem [#allocation7], 1
        %v240 = vld [vmem:[%s239] ss:$2 sm:$0x3]
        %v242 = vperm.slane %v240, 0
        %v243 = vperm.slane %v240, 1
        %v244 = vld [vmem:[#allocation2] sm:$0xff]
        %v245 = vld [vmem:[#allocation2 + $0x8] sm:$0xf]
        %v246 = vrot.slane %v238, 4
        %vm247 = vcmask 1043456
        %v248 = vsel %vm247, %v237, %v246
        %249 = vrot.lane.b32.xlu0 %v248, 111
        %v250 = vpop.permute.xlu0 %249
        %v251 = vrot.slane %v250, 4
        %vm252 = vcmask 908288
        %v253 = vsel %vm252, %v251, %v250
        %v256 = vmul.f32 %v244, %v253
        %v257 = vmul.f32 %v245, %v251
        %260 = vst [vmem:[#allocation1] ss:$2 sm:$0xff] %v256
        %s261 = scalar_lea.vmem [#allocation1], 16
        %262 = vst [vmem:[%s261] ss:$2 sm:$0xff] %v257
        %v263 = vld.sshfl [vmem:[#allocation1] sm:$0xff pattern:$0x75316420]
        %v264 = vld.sshfl [vmem:[#allocation1 + $0x8] sm:$0xff pattern:$0x75316420]
        %v265 = vld.sshfl [vmem:[#allocation1 + $0x10] sm:$0xff pattern:$0x75316420]
        %266 = vrot.lane.b32.xlu0 %v263, 17
        %v267 = vpop.permute.xlu0 %266
        %268 = vrot.lane.b32.xlu0 %v264, 17
        %v269 = vpop.permute.xlu0 %268
        %270 = vrot.lane.b32.xlu0 %v265, 17
        %v271 = vpop.permute.xlu0 %270
        %vm272 = vcmask 138240
        %v273 = vsel %vm272, %v267, %v269
        %v274 = vsel %vm272, %v269, %v271
        %277 = vst [vmem:[#allocation3] sm:$0xf] %v273
        %278 = vst [vmem:[#allocation3 + $0x8] sm:$0xf] %v274
        %v279 = vld [vmem:[#allocation2] sm:$0xff]
        %v280 = vld [vmem:[#allocation2 + $0x8] sm:$0xf]
        %s283 = scalar_lea.vmem [#allocation1], 1
        %284 = vst [vmem:[%s283] ss:$2 sm:$0xff] %v279
        %s285 = scalar_lea.vmem [#allocation1], 17
        %286 = vst [vmem:[%s285] ss:$2 sm:$0xff] %v280
        %v287 = vld.sshfl [vmem:[#allocation1] sm:$0xff pattern:$0x75316420]
        %v288 = vld.sshfl [vmem:[#allocation1 + $0x8] sm:$0xff pattern:$0x75316420]
        %v289 = vld.sshfl [vmem:[#allocation1 + $0x10] sm:$0xff pattern:$0x75316420]
        %290 = vrot.lane.b32.xlu0 %v287, 16
        %v291 = vpop.permute.xlu0 %290
        %292 = vrot.lane.b32.xlu0 %v288, 16
        %v293 = vpop.permute.xlu0 %292
        %294 = vrot.lane.b32.xlu0 %v289, 16
        %v295 = vpop.permute.xlu0 %294
        %vm296 = vcmask 130048
        %v297 = vsel %vm296, %v291, %v293
        %v298 = vsel %vm296, %v293, %v295
        %301 = vst [vmem:[#allocation3] sm:$0xf0] %v297
        %302 = vst [vmem:[#allocation3 + $0x8] sm:$0xf0] %v298
        %v303 = vld [vmem:[#allocation2] sm:$0xff]
        %v304 = vld [vmem:[#allocation2 + $0x8] sm:$0xf]
        %v305 = vrot.slane %v243, 4
        %v306 = vsel %vm247, %v242, %v305
        %307 = vrot.lane.b32.xlu0 %v306, 113
        %v308 = vpop.permute.xlu0 %307
        %v309 = vrot.slane %v308, 4
        %vm310 = vcmask 924672
        %v311 = vsel %vm310, %v309, %v308
        %v314 = vmul.f32 %v303, %v311
        %v315 = vmul.f32 %v304, %v309
        %318 = vst [vmem:[#allocation1] ss:$2 sm:$0xff] %v314
        %s319 = scalar_lea.vmem [#allocation1], 16
        %320 = vst [vmem:[%s319] ss:$2 sm:$0xff] %v315
        %v321 = vld.sshfl [vmem:[#allocation1] sm:$0xff pattern:$0x75316420]
        %v322 = vld.sshfl [vmem:[#allocation1 + $0x8] sm:$0xff pattern:$0x75316420]
        %v323 = vld.sshfl [vmem:[#allocation1 + $0x10] sm:$0xff pattern:$0x75316420]
        %324 = vrot.lane.b32.xlu0 %v321, 15
        %v325 = vpop.permute.xlu0 %324
        %326 = vrot.lane.b32.xlu0 %v322, 15
        %v327 = vpop.permute.xlu0 %326
        %328 = vrot.lane.b32.xlu0 %v323, 15
        %v329 = vpop.permute.xlu0 %328
        %vm330 = vcmask 121856
        %v331 = vsel %vm330, %v325, %v327
        %v332 = vsel %vm330, %v327, %v329
        %335 = vst [vmem:[#allocation3 + $0x10] sm:$0xf] %v331
        %336 = vst [vmem:[#allocation3 + $0x18] sm:$0xf] %v332
        %v337 = vld [vmem:[#allocation2] sm:$0xff]
        %v338 = vld [vmem:[#allocation2 + $0x8] sm:$0xf]
        %339 = vrot.lane.b32.xlu0 %v248, 127
        %v340 = vpop.permute.xlu0 %339
        %v341 = vrot.slane %v340, 4
        %vm342 = vcmask 1039360
        %v343 = vsel %vm342, %v341, %v340
        %v346 = vmul.f32 %v337, %v343
        %v347 = vmul.f32 %v338, %v341
        %s350 = scalar_lea.vmem [#allocation1], 1
        %351 = vst [vmem:[%s350] ss:$2 sm:$0xff] %v346
        %s352 = scalar_lea.vmem [#allocation1], 17
        %353 = vst [vmem:[%s352] ss:$2 sm:$0xff] %v347
        %v354 = vld.sshfl [vmem:[#allocation1] sm:$0xff pattern:$0x75316420]
        %v355 = vld.sshfl [vmem:[#allocation1 + $0x8] sm:$0xff pattern:$0x75316420]
        %v356 = vld.sshfl [vmem:[#allocation1 + $0x10] sm:$0xff pattern:$0x75316420]
        %357 = vrot.lane.b32.xlu0 %v354, 1
        %v358 = vpop.permute.xlu0 %357
        %359 = vrot.lane.b32.xlu0 %v355, 1
        %v360 = vpop.permute.xlu0 %359
        %361 = vrot.lane.b32.xlu0 %v356, 1
        %v362 = vpop.permute.xlu0 %361
        %vm363 = vcmask 7168
        %v364 = vsel %vm363, %v358, %v360
        %v365 = vsel %vm363, %v360, %v362
        %368 = vst [vmem:[#allocation3 + $0x10] sm:$0xf0] %v364
        %369 = vst [vmem:[#allocation3 + $0x18] sm:$0xf0] %v365
        %v370 = vld [vmem:[#allocation2 + $0x4] sm:$0xff]
        %372 = vst [vmem:[#allocation1] ss:$2 sm:$0xff] %v370
        %v373 = vld.sshfl [vmem:[#allocation1] sm:$0xff pattern:$0x75316420]
        %v374 = vld.sshfl [vmem:[#allocation1 + $0x8] sm:$0xff pattern:$0x75316420]
        %377 = vst [vmem:[#allocation3 + $0x20] sm:$0xf] %v373
        %378 = vst [vmem:[#allocation3 + $0x28] sm:$0xf] %v374
        %v379 = vld [vmem:[#allocation2 + $0x4] sm:$0xff]
        %v380 = vld [vmem:[#allocation2 + $0xc] sm:$0xf]
        %381 = vrot.lane.b32.xlu0 %v306, 1
        %v382 = vpop.permute.xlu0 %381
        %v383 = vrot.slane %v382, 4
        %v384 = vsel %vm363, %v383, %v382
        %v387 = vmul.f32 %v379, %v384
        %v388 = vmul.f32 %v380, %v383
        %s391 = scalar_lea.vmem [#allocation1], 1
        %392 = vst [vmem:[%s391] ss:$2 sm:$0xff] %v387
        %s393 = scalar_lea.vmem [#allocation1], 17
        %394 = vst [vmem:[%s393] ss:$2 sm:$0xff] %v388
        %v395 = vld.sshfl [vmem:[#allocation1] sm:$0xff pattern:$0x75316420]
        %v396 = vld.sshfl [vmem:[#allocation1 + $0x8] sm:$0xff pattern:$0x75316420]
        %v397 = vld.sshfl [vmem:[#allocation1 + $0x10] sm:$0xff pattern:$0x75316420]
        %398 = vrot.lane.b32.xlu0 %v395, 127
        %v399 = vpop.permute.xlu0 %398
        %400 = vrot.lane.b32.xlu0 %v396, 127
        %v401 = vpop.permute.xlu0 %400
        %402 = vrot.lane.b32.xlu0 %v397, 127
        %v403 = vpop.permute.xlu0 %402
        %v404 = vsel %vm342, %v399, %v401
        %v405 = vsel %vm342, %v401, %v403
        %408 = vst [vmem:[#allocation3 + $0x20] sm:$0xf0] %v404
        %409 = vst [vmem:[#allocation3 + $0x28] sm:$0xf0] %v405
        %v410 = vld [vmem:[#allocation2 + $0x4] sm:$0xff]
        %v411 = vld [vmem:[#allocation2 + $0xc] sm:$0xf]
        %412 = vrot.lane.b32.xlu0 %v248, 15
        %v413 = vpop.permute.xlu0 %412
        %v414 = vrot.slane %v413, 4
        %v415 = vsel %vm330, %v414, %v413
        %v418 = vmul.f32 %v410, %v415
        %v419 = vmul.f32 %v411, %v414
        %422 = vst [vmem:[#allocation1] ss:$2 sm:$0xff] %v418
        %s423 = scalar_lea.vmem [#allocation1], 16
        %424 = vst [vmem:[%s423] ss:$2 sm:$0xff] %v419
        %v425 = vld.sshfl [vmem:[#allocation1] sm:$0xff pattern:$0x75316420]
        %v426 = vld.sshfl [vmem:[#allocation1 + $0x8] sm:$0xff pattern:$0x75316420]
        %v427 = vld.sshfl [vmem:[#allocation1 + $0x10] sm:$0xff pattern:$0x75316420]
        %428 = vrot.lane.b32.xlu0 %v425, 113
        %v429 = vpop.permute.xlu0 %428
        %430 = vrot.lane.b32.xlu0 %v426, 113
        %v431 = vpop.permute.xlu0 %430
        %432 = vrot.lane.b32.xlu0 %v427, 113
        %v433 = vpop.permute.xlu0 %432
        %v434 = vsel %vm310, %v429, %v431
        %v435 = vsel %vm310, %v431, %v433
        %438 = vst [vmem:[#allocation3 + $0x30] sm:$0xf] %v434
        %439 = vst [vmem:[#allocation3 + $0x38] sm:$0xf] %v435
        %v440 = vld [vmem:[#allocation2 + $0x4] sm:$0xff]
        %v441 = vld [vmem:[#allocation2 + $0xc] sm:$0xf]
        %s444 = scalar_lea.vmem [#allocation1], 1
        %445 = vst [vmem:[%s444] ss:$2 sm:$0xff] %v440
        %s446 = scalar_lea.vmem [#allocation1], 17
        %447 = vst [vmem:[%s446] ss:$2 sm:$0xff] %v441
        %v448 = vld.sshfl [vmem:[#allocation1] sm:$0xff pattern:$0x75316420]
        %v449 = vld.sshfl [vmem:[#allocation1 + $0x8] sm:$0xff pattern:$0x75316420]
        %v450 = vld.sshfl [vmem:[#allocation1 + $0x10] sm:$0xff pattern:$0x75316420]
        %451 = vrot.lane.b32.xlu0 %v448, 112
        %v452 = vpop.permute.xlu0 %451
        %453 = vrot.lane.b32.xlu0 %v449, 112
        %v454 = vpop.permute.xlu0 %453
        %455 = vrot.lane.b32.xlu0 %v450, 112
        %v456 = vpop.permute.xlu0 %455
        %vm457 = vcmask 916480
        %v458 = vsel %vm457, %v452, %v454
        %v459 = vsel %vm457, %v454, %v456
        %462 = vst [vmem:[#allocation3 + $0x30] sm:$0xf0] %v458
        %463 = vst [vmem:[#allocation3 + $0x38] sm:$0xf0] %v459
        %v464 = vld [vmem:[#allocation2 + $0x4] sm:$0xff]
        %v465 = vld [vmem:[#allocation2 + $0xc] sm:$0xf]
        %466 = vrot.lane.b32.xlu0 %v306, 17
        %v467 = vpop.permute.xlu0 %466
        %v468 = vrot.slane %v467, 4
        %v469 = vsel %vm272, %v468, %v467
        %v472 = vmul.f32 %v464, %v469
        %v473 = vmul.f32 %v465, %v468
        %476 = vst [vmem:[#allocation1] ss:$2 sm:$0xff] %v472
        %s477 = scalar_lea.vmem [#allocation1], 16
        %478 = vst [vmem:[%s477] ss:$2 sm:$0xff] %v473
        %v479 = vld.sshfl [vmem:[#allocation1] sm:$0xff pattern:$0x75316420]
        %v480 = vld.sshfl [vmem:[#allocation1 + $0x8] sm:$0xff pattern:$0x75316420]
        %v481 = vld.sshfl [vmem:[#allocation1 + $0x10] sm:$0xff pattern:$0x75316420]
        %482 = vrot.lane.b32.xlu0 %v479, 111
        %v483 = vpop.permute.xlu0 %482
        %484 = vrot.lane.b32.xlu0 %v480, 111
        %v485 = vpop.permute.xlu0 %484
        %486 = vrot.lane.b32.xlu0 %v481, 111
        %v487 = vpop.permute.xlu0 %486
        %v488 = vsel %vm252, %v483, %v485
        %v489 = vsel %vm252, %v485, %v487
        %492 = vst [vmem:[#allocation3 + $0x40] sm:$0xf] %v488
        %493 = vst [vmem:[#allocation3 + $0x48] sm:$0xf] %v489
        %v494 = vld [vmem:[%s1] sm:$0xf]
        %v495 = vld [vmem:[#allocation3] sm:$0xff]
        %v496 = vld [vmem:[#allocation3 + $0x8] sm:$0xff]
        %v497 = vld [vmem:[#allocation3 + $0x10] sm:$0xff]
        %v498 = vld [vmem:[#allocation3 + $0x18] sm:$0xff]
        %v499 = vld [vmem:[#allocation3 + $0x20] sm:$0xff]
        %v500 = vld [vmem:[#allocation3 + $0x28] sm:$0xff]
        %v501 = vld [vmem:[#allocation3 + $0x30] sm:$0xff]
        %v502 = vld [vmem:[#allocation3 + $0x38] sm:$0xff]
        %v503 = vld [vmem:[#allocation3 + $0x40] sm:$0xf]
        %v504 = vld [vmem:[#allocation3 + $0x48] sm:$0xf]
        %v505 = vld [vmem:[%s2] sm:$0xf]
        %507 = vset.pattern.permute.xlu0 0
        %508 = vperm.xlu0 %507, %v505
        %v509 = vpop.permute.xlu0 %508
        %vm511 = vcmask 293888
        %v513 = vsel %vm511, %v494, 0
        %v516 = vsel %vm247, %v503, 0
        %v519 = vsel %vm247, %v504, 0
        %521 = vmatpush.msra.mxu0 0.0
        %522 = vmatpush.msra.mxu0 0.0
        %523 = vmatpush.msra.mxu0 0.0
        %524 = vmatpush.msra.mxu0 0.0
        %525 = vmatpush.msra.mxu0 0.0
        %526 = vmatpush.msra.mxu0 0.0
        %527 = vmatpush.msra.mxu0 0.0
        %528 = vmatpush.msra.mxu0 0.0
        %529 = vmatpush.msra.mxu0 0.0
        %530 = vmatpush.msra.mxu0 0.0
        %531 = vmatpush.msra.mxu0 0.0
        %532 = vmatpush.msra.mxu0 %v516
        %533 = vmatpush.msra.mxu0 %v501
        %534 = vmatpush.msra.mxu0 %v499
        %535 = vmatpush.msra.mxu0 %v497
        %536 = vmatpush.msra.mxu0 %v495
        %537 = vmatmul.f32.gmra.mxu0 %v513
        %v538 = vpop.f32.mrf.mxu0
        %v539 = vadd.f32 %v509, %v538
        %540 = vdwg.mxu0
        %541 = vmatpush.msra.mxu0 0.0
        %542 = vmatpush.msra.mxu0 0.0
        %543 = vmatpush.msra.mxu0 0.0
        %544 = vmatpush.msra.mxu0 0.0
        %545 = vmatpush.msra.mxu0 0.0
        %546 = vmatpush.msra.mxu0 0.0
        %547 = vmatpush.msra.mxu0 0.0
        %548 = vmatpush.msra.mxu0 0.0
        %549 = vmatpush.msra.mxu0 0.0
        %550 = vmatpush.msra.mxu0 0.0
        %551 = vmatpush.msra.mxu0 0.0
        %552 = vmatpush.msra.mxu0 %v519
        %553 = vmatpush.msra.mxu0 %v502
        %554 = vmatpush.msra.mxu0 %v500
        %555 = vmatpush.msra.mxu0 %v498
        %556 = vmatpush.msra.mxu0 %v496
        %557 = vmatmul.f32.gmra.mxu0 %v513
        %v558 = vpop.f32.mrf.mxu0
        %v559 = vadd.f32 %v509, %v558
        %560 = vdwg.mxu0
        %v561 = vld [vmem:[%s200] sm:$0xff]
        %v564 = vrot.slane %v559, 4
        %v565 = vsel %vm247, %v539, %v564
        %v567 = vadd.f32 %v561, %v565
        %568 = vst [vmem:[%s230] sm:$0xff] %v567
        %s569 = sand.u32 %s119, 1
        %s570 = scalar_lea.sflag [#allocation6], %s569
        %s571 = sand.u32 %s119, 1
        %s572 = smul.addr %s571, 8
        %s573 = scalar_lea.vmem [#allocation9], %s572
        // Predicated region
        $region45: #{tpu_custom_call.1} parent=35 // pred_check
          %p574 = pneg %p129
        $region46: #{tpu_custom_call.1} parent=35 // pred_check_branch
          %576 = sbr.rel (%p574) target = $region48
        $region47: #{tpu_custom_call.1} parent=35 // pred_region
          %578 = vsyncadd %s570, 0
          %s579 = smul.addr %s22, 2
          %s580 = smul.addr %s579, 4
          %s581 = scalar_lea.hbm %s4, %s580
          %s583 = sshll.u32 %s573, 4
          %s584 = int_to_ptr.vmem [resolvable:$true] %s583
          %s585 = sshll.u32 %s581, 4
          %s586 = int_to_ptr.hbm [resolvable:$true] %s585
          %588 = dma.vmem_to_hbm [thread:$0]  %s584, 128, %s586, %s570
        $region48: #{tpu_custom_call.1} parent=35 // pred_fallthru
          _
      $region36: #{tpu_custom_call.1} parent=5 // pred_fallthru
        _
      %p589 = scmp.le.s32.totalorder 2, %s17
      // Predicated region
      $region49: #{tpu_custom_call.1} parent=5 // pred_check
        %p590 = pneg %p589
      $region50: #{tpu_custom_call.1} parent=5 // pred_check_branch
        %592 = sbr.rel (%p590) target = $region52
      $region51: #{tpu_custom_call.1} parent=5 // pred_region
        %s593 = ssub.s32 %s17, 2
        // Predicated region
        $region53: #{tpu_custom_call.1} parent=51 // pred_check
          %p594 = pneg %p135
        $region54: #{tpu_custom_call.1} parent=51 // pred_check_branch
          %596 = sbr.rel (%p594) target = $region56
        $region55: #{tpu_custom_call.1} parent=51 // pred_region
          %s597 = sand.u32 %s120, 1
          %s598 = scalar_lea.sflag [#allocation6], %s597
          %s599 = sand.u32 %s120, 1
          %s600 = smul.addr %s599, 8
          %s601 = scalar_lea.vmem [#allocation9], %s600
          %603 = dma.done %s598, 128
        $region56: #{tpu_custom_call.1} parent=51 // pred_fallthru
          _
      $region52: #{tpu_custom_call.1} parent=5 // pred_fallthru
        _
    $region6: #{tpu_custom_call.1} parent=1 // loop_footer
      %s21 = sadd.s32 1, %s17
    $region7: #{tpu_custom_call.1} parent=1 // loop_footer_branch
      %16 = sbr.rel target = $region3
    $region8: #{tpu_custom_call.1} parent=1 // loop_exit
      _
    %604 = vsyncpa [#allocation5], 1
    %s605 = scalar_lea.sflag [#allocation5], 1
    %606 = vsyncpa %s605, 1
    %607 = vsyncpa [#allocation8], 1
    %608 = vsyncpa [#allocation6], 1
    %s609 = scalar_lea.sflag [#allocation6], 1
    %610 = vsyncpa %s609, 1

</llo_original>
